<compile_context>
chip_gen: v7x
topology: tpu7x:2x2x1
jax: 0.10.0
libtpu: 0.0.40
codegen_flags: <defaults>
</compile_context>

<pallas_src>
import jax
import jax.numpy as jnp
from jax import lax
from jax.experimental import pallas as pl
from jax.experimental.pallas import tpu as pltpu

BN_EPS = 1e-5
LANE = 128
SUBLANE = 8
VMEM_LIMIT = 32 * 1024 * 1024   # safe on v5e/v6e/v7x, far above our tile footprint
FUSE_VMEM_BUDGET = 20 * 1024 * 1024


def _pick_tile_b(batch, target=512):
    """Largest batch tile <= target that divides batch (sublane friendly)."""
    if batch <= target:
        return batch
    for t in range(target - (target % SUBLANE), SUBLANE - 1, -SUBLANE):
        if batch % t == 0:
            return t
    return batch  # no friendly divisor: process the whole batch as one tile


def _fused_vmem_bytes(B, in_f, emb_num, two_c, emb_dim, C, n_pad):
    """Rough VMEM footprint of the fully-fused kernel."""
    acts = 4 * B * (in_f + emb_num + 2 * two_c + emb_dim + 2 * C + n_pad)
    wgts = 2 * (in_f * two_c + emb_num * emb_dim + two_c * C + emb_dim * C
                + C * n_pad)
    vecs = 4 * 12 * (two_c + C) + 4 * 2 * n_pad
    return acts + wgts + vecs


# =========================== fused single-kernel path =========================
def _k_fused(inp_ref, emb_inp_ref, w1_ref, b1_ref, g1_ref, beta1_ref,
             we_ref, w2a_ref, w2b_ref, b2_ref, g2_ref, beta2_ref,
             w3_ref, b3_ref, out_ref):
    """Whole forward in one kernel; batch == the resident tile, so both
    BatchNorms compute their per-batch stats directly in VMEM."""
    f32, bf16 = jnp.float32, jnp.bfloat16
    inv_b = jnp.float32(1.0 / inp_ref.shape[0])

    # --- first block: Linear -> BN1 -> ReLU ---
    y1 = jnp.dot(inp_ref[...].astype(bf16), w1_ref[...],
                 preferred_element_type=f32) + b1_ref[...]
    mean1 = jnp.sum(y1, axis=0, keepdims=True) * inv_b
    var1 = jnp.maximum(jnp.sum(y1 * y1, axis=0, keepdims=True) * inv_b
                       - mean1 * mean1, 0.0)
    scale1 = g1_ref[...] * lax.rsqrt(var1 + BN_EPS)
    shift1 = beta1_ref[...] - mean1 * scale1
    h1 = jnp.maximum(y1 * scale1 + shift1, 0.0)

    # --- embedding linear (no bias) ---
    emb = jnp.dot(emb_inp_ref[...].astype(bf16), we_ref[...],
                  preferred_element_type=f32)

    # --- mid Linear (split concat) -> BN2 -> ReLU ---
    z = (jnp.dot(h1.astype(bf16), w2a_ref[...], preferred_element_type=f32)
         + jnp.dot(emb.astype(bf16), w2b_ref[...], preferred_element_type=f32)
         + b2_ref[...])
    mean2 = jnp.sum(z, axis=0, keepdims=True) * inv_b
    var2 = jnp.maximum(jnp.sum(z * z, axis=0, keepdims=True) * inv_b
                       - mean2 * mean2, 0.0)
    scale2 = g2_ref[...] * lax.rsqrt(var2 + BN_EPS)
    shift2 = beta2_ref[...] - mean2 * scale2
    h2 = jnp.maximum(z * scale2 + shift2, 0.0)

    # --- final Linear (lane-padded, unmasked store) ---
    out = jnp.dot(h2.astype(bf16), w3_ref[...],
                  preferred_element_type=f32) + b3_ref[...]
    out_ref[...] = out.astype(out_ref.dtype)


# ================================ pass 1 ======================================
def _k1_first_and_embed(inp_ref, emb_inp_ref, w1_ref, b1_ref, we_ref,
                        y1_ref, emb_ref, s1_ref, q1_ref):
    """y1 = inp@W1+b1 ; emb = emb_inp@We ; accumulate BN1 sum / sum-of-squares."""
    y1 = jnp.dot(inp_ref[...].astype(jnp.bfloat16), w1_ref[...],
                 preferred_element_type=jnp.float32) + b1_ref[...]
    y1_ref[...] = y1

    emb = jnp.dot(emb_inp_ref[...].astype(jnp.bfloat16), we_ref[...],
                  preferred_element_type=jnp.float32)
    emb_ref[...] = emb.astype(emb_ref.dtype)

    @pl.when(pl.program_id(0) == 0)
    def _init():
        s1_ref[...] = jnp.zeros_like(s1_ref)
        q1_ref[...] = jnp.zeros_like(q1_ref)

    s1_ref[...] += jnp.sum(y1, axis=0, keepdims=True)
    q1_ref[...] += jnp.sum(y1 * y1, axis=0, keepdims=True)


# ================================ pass 2 ======================================
def _k2_bn1_and_mid(y1_ref, emb_ref, sc1_ref, sh1_ref,
                    w2a_ref, w2b_ref, b2_ref,
                    z_ref, s2_ref, q2_ref):
    """h1 = ReLU(BN1(y1)); z = h1@W2a + emb@W2b + b2; accumulate BN2 stats."""
    h1 = jnp.maximum(y1_ref[...] * sc1_ref[...] + sh1_ref[...], 0.0)
    z = (jnp.dot(h1.astype(jnp.bfloat16), w2a_ref[...],
                 preferred_element_type=jnp.float32)
         + jnp.dot(emb_ref[...], w2b_ref[...],
                   preferred_element_type=jnp.float32)
         + b2_ref[...])
    z_ref[...] = z

    @pl.when(pl.program_id(0) == 0)
    def _init():
        s2_ref[...] = jnp.zeros_like(s2_ref)
        q2_ref[...] = jnp.zeros_like(q2_ref)

    s2_ref[...] += jnp.sum(z, axis=0, keepdims=True)
    q2_ref[...] += jnp.sum(z * z, axis=0, keepdims=True)


# ================================ pass 3 ======================================
def _k3_bn2_and_out(z_ref, sc2_ref, sh2_ref, w3_ref, b3_ref, out_ref):
    """out = ReLU(BN2(z)) @ W3_pad + b3_pad   (lane-dense 128-multiple store)."""
    h2 = jnp.maximum(z_ref[...] * sc2_ref[...] + sh2_ref[...], 0.0)
    out = jnp.dot(h2.astype(jnp.bfloat16), w3_ref[...],
                  preferred_element_type=jnp.float32) + b3_ref[...]
    out_ref[...] = out.astype(out_ref.dtype)


# ================================ wrapper =====================================
def base_model_embed_forward(inp, emb_inp, params, *, tile_b=None):
    f32, bf16 = jnp.float32, jnp.bfloat16
    B, in_features = inp.shape
    emb_num = emb_inp.shape[1]
    two_c = params["w1"].shape[1]
    emb_dim = params["we"].shape[1]
    C = params["w2a"].shape[1]
    num_classes = params["w3"].shape[1]
    n_pad = pl.cdiv(num_classes, LANE) * LANE        # lane-dense output width

    # bf16 copies of matmul weights (MXU fast path); accumulation stays f32.
    w1 = params["w1"].astype(bf16)
    we = params["we"].astype(bf16)
    w2a = params["w2a"].astype(bf16)
    w2b = params["w2b"].astype(bf16)
    w3 = jnp.zeros((C, n_pad), f32).at[:, :num_classes].set(params["w3"]).astype(bf16)
    b3 = jnp.zeros((1, n_pad), f32).at[:, :num_classes].set(params["b3"])

    fused_ok = (
        tile_b is None
        and B <= 4096
        and _fused_vmem_bytes(B, in_features, emb_num, two_c, emb_dim, C, n_pad)
        <= FUSE_VMEM_BUDGET)

    # ------------------------- fused single-kernel path ----------------------
    if fused_ok:
        def full(shape):
            return pl.BlockSpec(shape, lambda i: (0, 0))

        flops = (2 * B * (in_features * two_c + emb_num * emb_dim
                          + two_c * C + emb_dim * C + C * n_pad)
                 + 10 * B * (two_c + C))
        bytes_acc = (4 * B * (in_features + emb_num + n_pad)
                     + 2 * (in_features * two_c + emb_num * emb_dim
                            + two_c * C + emb_dim * C + C * n_pad)
                     + 4 * (6 * two_c + 6 * C + 2 * n_pad))
        out_pad = pl.pallas_call(
            _k_fused,
            grid=(1,),
            in_specs=[full((B, in_features)), full((B, emb_num)),
                      full((in_features, two_c)), full((1, two_c)),
                      full((1, two_c)), full((1, two_c)),
                      full((emb_num, emb_dim)),
                      full((two_c, C)), full((emb_dim, C)),
                      full((1, C)), full((1, C)), full((1, C)),
                      full((C, n_pad)), full((1, n_pad))],
            out_specs=full((B, n_pad)),
            out_shape=jax.ShapeDtypeStruct((B, n_pad), f32),
            compiler_params=pltpu.CompilerParams(
                dimension_semantics=("arbitrary",),
                vmem_limit_bytes=VMEM_LIMIT),
            cost_estimate=pl.CostEstimate(flops=flops,
                                          transcendentals=2 * (two_c + C),
                                          bytes_accessed=bytes_acc),
        )(inp, emb_inp, w1, params["b1"], params["g1"], params["beta1"],
          we, w2a, w2b, params["b2"], params["g2"], params["beta2"], w3, b3)
        return out_pad[:, :num_classes]

    # -------------------------- batch-streamed 3-pass path -------------------
    tb = _pick_tile_b(B) if tile_b is None else tile_b
    assert B % tb == 0, (B, tb)
    grid = (B // tb,)

    def row_spec(width):                       # streamed over the batch axis
        return pl.BlockSpec((tb, width), lambda i: (i, 0))

    def resident(shape):                       # weights/params: same block always
        return pl.BlockSpec(shape, lambda i: (0, 0))

    acc_params = pltpu.CompilerParams(         # stats accumulator across tiles
        dimension_semantics=("arbitrary",), vmem_limit_bytes=VMEM_LIMIT)
    par_params = pltpu.CompilerParams(         # independent per tile
        dimension_semantics=("parallel",), vmem_limit_bytes=VMEM_LIMIT)

    # ---------------- pass 1: first Linear + embed + BN1 stats ----------------
    flops1 = 2 * B * (in_features * two_c + emb_num * emb_dim)
    bytes1 = (4 * B * (in_features + emb_num + two_c) + 2 * B * emb_dim
              + 2 * (in_features * two_c + emb_num * emb_dim) + 12 * two_c)
    y1, emb, s1, q1 = pl.pallas_call(
        _k1_first_and_embed,
        grid=grid,
        in_specs=[row_spec(in_features), row_spec(emb_num),
                  resident((in_features, two_c)), resident((1, two_c)),
                  resident((emb_num, emb_dim))],
        out_specs=[row_spec(two_c), row_spec(emb_dim),
                   resident((1, two_c)), resident((1, two_c))],
        out_shape=[jax.ShapeDtypeStruct((B, two_c), f32),
                   jax.ShapeDtypeStruct((B, emb_dim), bf16),
                   jax.ShapeDtypeStruct((1, two_c), f32),
                   jax.ShapeDtypeStruct((1, two_c), f32)],
        compiler_params=acc_params,
        cost_estimate=pl.CostEstimate(flops=flops1, transcendentals=0,
                                      bytes_accessed=bytes1),
    )(inp, emb_inp, w1, params["b1"], we)

    # fold BN1 into a single per-feature multiply-add (tiny (1,N) math in XLA)
    inv_b = jnp.float32(1.0 / B)
    mean1 = s1 * inv_b
    var1 = jnp.maximum(q1 * inv_b - mean1 * mean1, 0.0)
    scale1 = params["g1"] * lax.rsqrt(var1 + BN_EPS)
    shift1 = params["beta1"] - mean1 * scale1

    # ---------------- pass 2: BN1 apply + mid Linear + BN2 stats --------------
    flops2 = 2 * B * C * (two_c + emb_dim) + 6 * B * two_c
    bytes2 = (4 * B * (two_c + C) + 2 * B * emb_dim
              + 2 * C * (two_c + emb_dim) + 4 * (2 * two_c + 3 * C))
    z, s2, q2 = pl.pallas_call(
        _k2_bn1_and_mid,
        grid=grid,
        in_specs=[row_spec(two_c), row_spec(emb_dim),
                  resident((1, two_c)), resident((1, two_c)),
                  resident((two_c, C)), resident((emb_dim, C)), resident((1, C))],
        out_specs=[row_spec(C), resident((1, C)), resident((1, C))],
        out_shape=[jax.ShapeDtypeStruct((B, C), f32),
                   jax.ShapeDtypeStruct((1, C), f32),
                   jax.ShapeDtypeStruct((1, C), f32)],
        compiler_params=acc_params,
        cost_estimate=pl.CostEstimate(flops=flops2, transcendentals=0,
                                      bytes_accessed=bytes2),
    )(y1, emb, scale1, shift1, w2a, w2b, params["b2"])

    mean2 = s2 * inv_b
    var2 = jnp.maximum(q2 * inv_b - mean2 * mean2, 0.0)
    scale2 = params["g2"] * lax.rsqrt(var2 + BN_EPS)
    shift2 = params["beta2"] - mean2 * scale2

    # ---------------- pass 3: BN2 apply + final Linear (lane-padded) ----------
    flops3 = 2 * B * C * n_pad + 3 * B * C
    bytes3 = 4 * B * (C + n_pad) + 2 * C * n_pad + 4 * n_pad + 8 * C
    out_pad = pl.pallas_call(
        _k3_bn2_and_out,
        grid=grid,
        in_specs=[row_spec(C), resident((1, C)), resident((1, C)),
                  resident((C, n_pad)), resident((1, n_pad))],
        out_specs=row_spec(n_pad),
        out_shape=jax.ShapeDtypeStruct((B, n_pad), f32),
        compiler_params=par_params,
        cost_estimate=pl.CostEstimate(flops=flops3, transcendentals=0,
                                      bytes_accessed=bytes3),
    )(z, scale2, shift2, w3, b3)

    return out_pad[:, :num_classes]


# ================================ params ======================================
def init_params(key, *, in_features, complexity, emb_num, emb_dim, num_classes):
    """Deterministic synthetic parameter init (weights stored as [in, out])."""
    # TODO(synk): config['path'] checkpoint restore (torch.load) is not translated;
    #             weights are synthesized in-script.
    two_c = 2 * complexity
    ks = jax.random.split(key, 8)

    def lin(k, fan_in, fan_out):
        scale = 1.0 / jnp.sqrt(jnp.float32(fan_in))
        return jax.random.uniform(k, (fan_in, fan_out), jnp.float32, -scale, scale)

    w2 = lin(ks[3], two_c + emb_dim, complexity)   # full mid linear, split below
    return {
        "w1": lin(ks[0], in_features, two_c),
        "b1": jax.random.uniform(ks[1], (1, two_c), jnp.float32, -0.1, 0.1),
        "g1": jnp.ones((1, two_c), jnp.float32),
        "beta1": jnp.zeros((1, two_c), jnp.float32),
        "we": lin(ks[2], emb_num, emb_dim),
        "w2a": w2[:two_c, :],
        "w2b": w2[two_c:, :],
        "b2": jax.random.uniform(ks[4], (1, complexity), jnp.float32, -0.1, 0.1),
        "g2": jnp.ones((1, complexity), jnp.float32),
        "beta2": jnp.zeros((1, complexity), jnp.float32),
        "w3": lin(ks[5], complexity, num_classes),
        "b3": jax.random.uniform(ks[6], (1, num_classes), jnp.float32, -0.1, 0.1),
    }


def _reference(inp, emb_inp, params):
    """Pure-JAX reference mirroring the kernel's bf16-operand / f32-acc dots."""
    bf16, f32 = jnp.bfloat16, jnp.float32

    def dot_bf16(x, w):
        return jnp.dot(x.astype(bf16), w.astype(bf16), preferred_element_type=f32)

    y1 = dot_bf16(inp, params["w1"]) + params["b1"]
    mean1 = jnp.mean(y1, axis=0, keepdims=True)
    var1 = jnp.mean(y1 * y1, axis=0, keepdims=True) - mean1 * mean1
    h1 = jnp.maximum((y1 - mean1) * lax.rsqrt(var1 + BN_EPS) * params["g1"]
                     + params["beta1"], 0.0)
    emb = dot_bf16(emb_inp, params["we"]).astype(bf16).astype(f32)
    z = dot_bf16(h1, params["w2a"]) + dot_bf16(emb, params["w2b"]) + params["b2"]
    mean2 = jnp.mean(z, axis=0, keepdims=True)
    var2 = jnp.mean(z * z, axis=0, keepdims=True) - mean2 * mean2
    h2 = jnp.maximum((z - mean2) * lax.rsqrt(var2 + BN_EPS) * params["g2"]
                     + params["beta2"], 0.0)
    return dot_bf16(h2, params["w3"]) + params["b3"]


if __name__ == "__main__":
    # ---- test 1: small config -> fused single-kernel path -------------------
    # config: in_features=32, complexity=16, emb_num=8, emb_dim=16, num_classes=5
    B, in_features, complexity = 8, 32, 16
    emb_num, emb_dim, num_classes = 8, 16, 5

    key = jax.random.PRNGKey(0)
    k_inp, k_emb, k_par, k_rest = jax.random.split(key, 4)
    inp = jax.random.normal(k_inp, (B, in_features), jnp.float32)
    emb_inp = jax.random.normal(k_emb, (B, emb_num), jnp.float32)
    params = init_params(
        k_par, in_features=in_features, complexity=complexity,
        emb_num=emb_num, emb_dim=emb_dim, num_classes=num_classes)

    out = jax.jit(base_model_embed_forward)(inp, emb_inp, params)
    jax.block_until_ready(out)
    assert out.shape == (B, num_classes), out.shape

    ref = _reference(inp, emb_inp, params)
    max_err = float(jnp.max(jnp.abs(out - ref)))
    assert jnp.allclose(out, ref, rtol=2e-2, atol=2e-2), max_err

    # ---- test 2: larger batch -> 3-pass batch-streamed path (grid > 1) ------
    B2, in2, cx2, en2, ed2, nc2 = 1024, 64, 128, 32, 64, 10
    k_i2, k_e2, k_p2 = jax.random.split(k_rest, 3)
    inp2 = jax.random.normal(k_i2, (B2, in2), jnp.float32)
    emb2 = jax.random.normal(k_e2, (B2, en2), jnp.float32)
    params2 = init_params(
        k_p2, in_features=in2, complexity=cx2,
        emb_num=en2, emb_dim=ed2, num_classes=nc2)

    out2 = jax.jit(
        lambda a, b, p: base_model_embed_forward(a, b, p, tile_b=512)
    )(inp2, emb2, params2)
    jax.block_until_ready(out2)
    assert out2.shape == (B2, nc2), out2.shape

    ref2 = _reference(inp2, emb2, params2)
    max_err2 = float(jnp.max(jnp.abs(out2 - ref2)))
    assert jnp.allclose(out2, ref2, rtol=3e-2, atol=3e-2), max_err2

    print("KERNEL_OK")
</pallas_src>

<mosaic_0001>
module attributes {stable_mosaic.version = 11 : i64} {
  func.func @_k_fused(%arg0: i32, %arg1: memref<8x32xf32, #tpu.memory_space<vmem>>, %arg2: memref<8x8xf32, #tpu.memory_space<vmem>>, %arg3: memref<32x32xbf16, #tpu.memory_space<vmem>>, %arg4: memref<1x32xf32, #tpu.memory_space<vmem>>, %arg5: memref<1x32xf32, #tpu.memory_space<vmem>>, %arg6: memref<1x32xf32, #tpu.memory_space<vmem>>, %arg7: memref<8x16xbf16, #tpu.memory_space<vmem>>, %arg8: memref<32x16xbf16, #tpu.memory_space<vmem>>, %arg9: memref<16x16xbf16, #tpu.memory_space<vmem>>, %arg10: memref<1x16xf32, #tpu.memory_space<vmem>>, %arg11: memref<1x16xf32, #tpu.memory_space<vmem>>, %arg12: memref<1x16xf32, #tpu.memory_space<vmem>>, %arg13: memref<16x128xbf16, #tpu.memory_space<vmem>>, %arg14: memref<1x128xf32, #tpu.memory_space<vmem>>, %arg15: memref<8x128xf32, #tpu.memory_space<vmem>>) attributes {dimension_semantics = [#tpu.dimension_semantics<arbitrary>], iteration_bounds = array<i64: 1>, scalar_prefetch = 0 : i64, scratch_operands = 0 : i64, tpu.core_type = #tpu.core_type<tc>, window_params = [{pipeline_mode = #tpu.pipeline_mode<synchronous>, transform_indices = @transform_0, window_bounds = array<i64: 8, 32>}, {pipeline_mode = #tpu.pipeline_mode<synchronous>, transform_indices = @transform_1, window_bounds = array<i64: 8, 8>}, {pipeline_mode = #tpu.pipeline_mode<synchronous>, transform_indices = @transform_2, window_bounds = array<i64: 32, 32>}, {pipeline_mode = #tpu.pipeline_mode<synchronous>, transform_indices = @transform_3, window_bounds = array<i64: 1, 32>}, {pipeline_mode = #tpu.pipeline_mode<synchronous>, transform_indices = @transform_4, window_bounds = array<i64: 1, 32>}, {pipeline_mode = #tpu.pipeline_mode<synchronous>, transform_indices = @transform_5, window_bounds = array<i64: 1, 32>}, {pipeline_mode = #tpu.pipeline_mode<synchronous>, transform_indices = @transform_6, window_bounds = array<i64: 8, 16>}, {pipeline_mode = #tpu.pipeline_mode<synchronous>, transform_indices = @transform_7, window_bounds = array<i64: 32, 16>}, {pipeline_mode = #tpu.pipeline_mode<synchronous>, transform_indices = @transform_8, window_bounds = array<i64: 16, 16>}, {pipeline_mode = #tpu.pipeline_mode<synchronous>, transform_indices = @transform_9, window_bounds = array<i64: 1, 16>}, {pipeline_mode = #tpu.pipeline_mode<synchronous>, transform_indices = @transform_10, window_bounds = array<i64: 1, 16>}, {pipeline_mode = #tpu.pipeline_mode<synchronous>, transform_indices = @transform_11, window_bounds = array<i64: 1, 16>}, {pipeline_mode = #tpu.pipeline_mode<synchronous>, transform_indices = @transform_12, window_bounds = array<i64: 16, 128>}, {pipeline_mode = #tpu.pipeline_mode<synchronous>, transform_indices = @transform_13, window_bounds = array<i64: 1, 128>}, {pipeline_mode = #tpu.pipeline_mode<synchronous>, transform_indices = @transform_14, window_bounds = array<i64: 8, 128>}]} {
    %c0 = arith.constant 0 : index
    %c0_0 = arith.constant 0 : index
    %0 = vector.load %arg1[%c0, %c0_0] : memref<8x32xf32, #tpu.memory_space<vmem>>, vector<8x32xf32>
    %1 = arith.truncf %0 : vector<8x32xf32> to vector<8x32xbf16>
    %c0_1 = arith.constant 0 : index
    %c0_2 = arith.constant 0 : index
    %2 = vector.load %arg3[%c0_1, %c0_2] : memref<32x32xbf16, #tpu.memory_space<vmem>>, vector<32x32xbf16>
    %cst = arith.constant dense<0.000000e+00> : vector<8x32xf32>
    %3 = tpu.matmul %1, %2, %cst {dimension_numbers = #tpu.dot_dimension_numbers<[1], [0], [0], [1], [0, 0, 1, 1], [], []>} : vector<8x32xbf16>, vector<32x32xbf16>, vector<8x32xf32> -> vector<8x32xf32>
    %c0_3 = arith.constant 0 : index
    %c0_4 = arith.constant 0 : index
    %4 = vector.load %arg4[%c0_3, %c0_4] : memref<1x32xf32, #tpu.memory_space<vmem>>, vector<1x32xf32>
    %5 = vector.broadcast %4 : vector<1x32xf32> to vector<8x32xf32>
    %6 = arith.addf %3, %5 : vector<8x32xf32>
    %cst_5 = arith.constant dense<0.000000e+00> : vector<32xf32>
    %7 = vector.multi_reduction <add>, %6, %cst_5 [0] : vector<8x32xf32> to vector<32xf32>
    %8 = vector.shape_cast %7 : vector<32xf32> to vector<1x32xf32>
    %cst_6 = arith.constant 1.250000e-01 : f32
    %9 = vector.broadcast %cst_6 : f32 to vector<1x32xf32>
    %10 = arith.mulf %8, %9 : vector<1x32xf32>
    %11 = arith.mulf %6, %6 : vector<8x32xf32>
    %cst_7 = arith.constant dense<0.000000e+00> : vector<32xf32>
    %12 = vector.multi_reduction <add>, %11, %cst_7 [0] : vector<8x32xf32> to vector<32xf32>
    %13 = vector.shape_cast %12 : vector<32xf32> to vector<1x32xf32>
    %cst_8 = arith.constant 1.250000e-01 : f32
    %14 = vector.broadcast %cst_8 : f32 to vector<1x32xf32>
    %15 = arith.mulf %13, %14 : vector<1x32xf32>
    %16 = arith.mulf %10, %10 : vector<1x32xf32>
    %17 = arith.subf %15, %16 : vector<1x32xf32>
    %cst_9 = arith.constant 0.000000e+00 : f32
    %18 = vector.broadcast %cst_9 : f32 to vector<1x32xf32>
    %19 = arith.maximumf %17, %18 : vector<1x32xf32>
    %c0_10 = arith.constant 0 : index
    %c0_11 = arith.constant 0 : index
    %20 = vector.load %arg5[%c0_10, %c0_11] : memref<1x32xf32, #tpu.memory_space<vmem>>, vector<1x32xf32>
    %cst_12 = arith.constant 9.99999974E-6 : f32
    %21 = vector.broadcast %cst_12 : f32 to vector<1x32xf32>
    %22 = arith.addf %19, %21 : vector<1x32xf32>
    %23 = math.rsqrt %22 : vector<1x32xf32>
    %24 = arith.mulf %20, %23 : vector<1x32xf32>
    %c0_13 = arith.constant 0 : index
    %c0_14 = arith.constant 0 : index
    %25 = vector.load %arg6[%c0_13, %c0_14] : memref<1x32xf32, #tpu.memory_space<vmem>>, vector<1x32xf32>
    %26 = arith.mulf %10, %24 : vector<1x32xf32>
    %27 = arith.subf %25, %26 : vector<1x32xf32>
    %28 = vector.broadcast %24 : vector<1x32xf32> to vector<8x32xf32>
    %29 = arith.mulf %6, %28 : vector<8x32xf32>
    %30 = vector.broadcast %27 : vector<1x32xf32> to vector<8x32xf32>
    %31 = arith.addf %29, %30 : vector<8x32xf32>
    %cst_15 = arith.constant 0.000000e+00 : f32
    %32 = vector.broadcast %cst_15 : f32 to vector<8x32xf32>
    %33 = arith.maximumf %31, %32 : vector<8x32xf32>
    %c0_16 = arith.constant 0 : index
    %c0_17 = arith.constant 0 : index
    %34 = vector.load %arg2[%c0_16, %c0_17] : memref<8x8xf32, #tpu.memory_space<vmem>>, vector<8x8xf32>
    %35 = arith.truncf %34 : vector<8x8xf32> to vector<8x8xbf16>
    %c0_18 = arith.constant 0 : index
    %c0_19 = arith.constant 0 : index
    %36 = vector.load %arg7[%c0_18, %c0_19] : memref<8x16xbf16, #tpu.memory_space<vmem>>, vector<8x16xbf16>
    %cst_20 = arith.constant dense<0.000000e+00> : vector<8x16xf32>
    %37 = tpu.matmul %35, %36, %cst_20 {dimension_numbers = #tpu.dot_dimension_numbers<[1], [0], [0], [1], [0, 0, 1, 1], [], []>} : vector<8x8xbf16>, vector<8x16xbf16>, vector<8x16xf32> -> vector<8x16xf32>
    %38 = arith.truncf %33 : vector<8x32xf32> to vector<8x32xbf16>
    %c0_21 = arith.constant 0 : index
    %c0_22 = arith.constant 0 : index
    %39 = vector.load %arg8[%c0_21, %c0_22] : memref<32x16xbf16, #tpu.memory_space<vmem>>, vector<32x16xbf16>
    %cst_23 = arith.constant dense<0.000000e+00> : vector<8x16xf32>
    %40 = tpu.matmul %38, %39, %cst_23 {dimension_numbers = #tpu.dot_dimension_numbers<[1], [0], [0], [1], [0, 0, 1, 1], [], []>} : vector<8x32xbf16>, vector<32x16xbf16>, vector<8x16xf32> -> vector<8x16xf32>
    %41 = arith.truncf %37 : vector<8x16xf32> to vector<8x16xbf16>
    %c0_24 = arith.constant 0 : index
    %c0_25 = arith.constant 0 : index
    %42 = vector.load %arg9[%c0_24, %c0_25] : memref<16x16xbf16, #tpu.memory_space<vmem>>, vector<16x16xbf16>
    %cst_26 = arith.constant dense<0.000000e+00> : vector<8x16xf32>
    %43 = tpu.matmul %41, %42, %cst_26 {dimension_numbers = #tpu.dot_dimension_numbers<[1], [0], [0], [1], [0, 0, 1, 1], [], []>} : vector<8x16xbf16>, vector<16x16xbf16>, vector<8x16xf32> -> vector<8x16xf32>
    %44 = arith.addf %40, %43 : vector<8x16xf32>
    %c0_27 = arith.constant 0 : index
    %c0_28 = arith.constant 0 : index
    %45 = vector.load %arg10[%c0_27, %c0_28] : memref<1x16xf32, #tpu.memory_space<vmem>>, vector<1x16xf32>
    %46 = vector.broadcast %45 : vector<1x16xf32> to vector<8x16xf32>
    %47 = arith.addf %44, %46 : vector<8x16xf32>
    %cst_29 = arith.constant dense<0.000000e+00> : vector<16xf32>
    %48 = vector.multi_reduction <add>, %47, %cst_29 [0] : vector<8x16xf32> to vector<16xf32>
    %49 = vector.shape_cast %48 : vector<16xf32> to vector<1x16xf32>
    %cst_30 = arith.constant 1.250000e-01 : f32
    %50 = vector.broadcast %cst_30 : f32 to vector<1x16xf32>
    %51 = arith.mulf %49, %50 : vector<1x16xf32>
    %52 = arith.mulf %47, %47 : vector<8x16xf32>
    %cst_31 = arith.constant dense<0.000000e+00> : vector<16xf32>
    %53 = vector.multi_reduction <add>, %52, %cst_31 [0] : vector<8x16xf32> to vector<16xf32>
    %54 = vector.shape_cast %53 : vector<16xf32> to vector<1x16xf32>
    %cst_32 = arith.constant 1.250000e-01 : f32
    %55 = vector.broadcast %cst_32 : f32 to vector<1x16xf32>
    %56 = arith.mulf %54, %55 : vector<1x16xf32>
    %57 = arith.mulf %51, %51 : vector<1x16xf32>
    %58 = arith.subf %56, %57 : vector<1x16xf32>
    %cst_33 = arith.constant 0.000000e+00 : f32
    %59 = vector.broadcast %cst_33 : f32 to vector<1x16xf32>
    %60 = arith.maximumf %58, %59 : vector<1x16xf32>
    %c0_34 = arith.constant 0 : index
    %c0_35 = arith.constant 0 : index
    %61 = vector.load %arg11[%c0_34, %c0_35] : memref<1x16xf32, #tpu.memory_space<vmem>>, vector<1x16xf32>
    %cst_36 = arith.constant 9.99999974E-6 : f32
    %62 = vector.broadcast %cst_36 : f32 to vector<1x16xf32>
    %63 = arith.addf %60, %62 : vector<1x16xf32>
    %64 = math.rsqrt %63 : vector<1x16xf32>
    %65 = arith.mulf %61, %64 : vector<1x16xf32>
    %c0_37 = arith.constant 0 : index
    %c0_38 = arith.constant 0 : index
    %66 = vector.load %arg12[%c0_37, %c0_38] : memref<1x16xf32, #tpu.memory_space<vmem>>, vector<1x16xf32>
    %67 = arith.mulf %51, %65 : vector<1x16xf32>
    %68 = arith.subf %66, %67 : vector<1x16xf32>
    %69 = vector.broadcast %65 : vector<1x16xf32> to vector<8x16xf32>
    %70 = arith.mulf %47, %69 : vector<8x16xf32>
    %71 = vector.broadcast %68 : vector<1x16xf32> to vector<8x16xf32>
    %72 = arith.addf %70, %71 : vector<8x16xf32>
    %cst_39 = arith.constant 0.000000e+00 : f32
    %73 = vector.broadcast %cst_39 : f32 to vector<8x16xf32>
    %74 = arith.maximumf %72, %73 : vector<8x16xf32>
    %75 = arith.truncf %74 : vector<8x16xf32> to vector<8x16xbf16>
    %c0_40 = arith.constant 0 : index
    %c0_41 = arith.constant 0 : index
    %76 = vector.load %arg13[%c0_40, %c0_41] : memref<16x128xbf16, #tpu.memory_space<vmem>>, vector<16x128xbf16>
    %cst_42 = arith.constant dense<0.000000e+00> : vector<8x128xf32>
    %77 = tpu.matmul %75, %76, %cst_42 {dimension_numbers = #tpu.dot_dimension_numbers<[1], [0], [0], [1], [0, 0, 1, 1], [], []>} : vector<8x16xbf16>, vector<16x128xbf16>, vector<8x128xf32> -> vector<8x128xf32>
    %c0_43 = arith.constant 0 : index
    %c0_44 = arith.constant 0 : index
    %78 = vector.load %arg14[%c0_43, %c0_44] : memref<1x128xf32, #tpu.memory_space<vmem>>, vector<1x128xf32>
    %79 = vector.broadcast %78 : vector<1x128xf32> to vector<8x128xf32>
    %80 = arith.addf %77, %79 : vector<8x128xf32>
    %c0_45 = arith.constant 0 : index
    %c0_46 = arith.constant 0 : index
    %81 = vector.load %arg15[%c0_45, %c0_46] : memref<8x128xf32, #tpu.memory_space<vmem>>, vector<8x128xf32>
    tpu.vector_store %arg15[%c0_45, %c0_46], %80 {strides = array<i32>} : memref<8x128xf32, #tpu.memory_space<vmem>>, vector<8x128xf32>,
    return
  }
  func.func @transform_0(%arg0: i32) -> (i32, i32) {
    %c0_i32 = arith.constant 0 : i32
    %c0_i32_0 = arith.constant 0 : i32
    %c0_i32_1 = arith.constant 0 : i32
    return %c0_i32, %c0_i32_0 : i32, i32
  }
  func.func @transform_1(%arg0: i32) -> (i32, i32) {
    %c0_i32 = arith.constant 0 : i32
    %c0_i32_0 = arith.constant 0 : i32
    %c0_i32_1 = arith.constant 0 : i32
    return %c0_i32, %c0_i32_0 : i32, i32
  }
  func.func @transform_2(%arg0: i32) -> (i32, i32) {
    %c0_i32 = arith.constant 0 : i32
    %c0_i32_0 = arith.constant 0 : i32
    %c0_i32_1 = arith.constant 0 : i32
    return %c0_i32, %c0_i32_0 : i32, i32
  }
  func.func @transform_3(%arg0: i32) -> (i32, i32) {
    %c0_i32 = arith.constant 0 : i32
    %c0_i32_0 = arith.constant 0 : i32
    %c0_i32_1 = arith.constant 0 : i32
    return %c0_i32, %c0_i32_0 : i32, i32
  }
  func.func @transform_4(%arg0: i32) -> (i32, i32) {
    %c0_i32 = arith.constant 0 : i32
    %c0_i32_0 = arith.constant 0 : i32
    %c0_i32_1 = arith.constant 0 : i32
    return %c0_i32, %c0_i32_0 : i32, i32
  }
  func.func @transform_5(%arg0: i32) -> (i32, i32) {
    %c0_i32 = arith.constant 0 : i32
    %c0_i32_0 = arith.constant 0 : i32
    %c0_i32_1 = arith.constant 0 : i32
    return %c0_i32, %c0_i32_0 : i32, i32
  }
  func.func @transform_6(%arg0: i32) -> (i32, i32) {
    %c0_i32 = arith.constant 0 : i32
    %c0_i32_0 = arith.constant 0 : i32
    %c0_i32_1 = arith.constant 0 : i32
    return %c0_i32, %c0_i32_0 : i32, i32
  }
  func.func @transform_7(%arg0: i32) -> (i32, i32) {
    %c0_i32 = arith.constant 0 : i32
    %c0_i32_0 = arith.constant 0 : i32
    %c0_i32_1 = arith.constant 0 : i32
    return %c0_i32, %c0_i32_0 : i32, i32
  }
  func.func @transform_8(%arg0: i32) -> (i32, i32) {
    %c0_i32 = arith.constant 0 : i32
    %c0_i32_0 = arith.constant 0 : i32
    %c0_i32_1 = arith.constant 0 : i32
    return %c0_i32, %c0_i32_0 : i32, i32
  }
  func.func @transform_9(%arg0: i32) -> (i32, i32) {
    %c0_i32 = arith.constant 0 : i32
    %c0_i32_0 = arith.constant 0 : i32
    %c0_i32_1 = arith.constant 0 : i32
    return %c0_i32, %c0_i32_0 : i32, i32
  }
  func.func @transform_10(%arg0: i32) -> (i32, i32) {
    %c0_i32 = arith.constant 0 : i32
    %c0_i32_0 = arith.constant 0 : i32
    %c0_i32_1 = arith.constant 0 : i32
    return %c0_i32, %c0_i32_0 : i32, i32
  }
  func.func @transform_11(%arg0: i32) -> (i32, i32) {
    %c0_i32 = arith.constant 0 : i32
    %c0_i32_0 = arith.constant 0 : i32
    %c0_i32_1 = arith.constant 0 : i32
    return %c0_i32, %c0_i32_0 : i32, i32
  }
  func.func @transform_12(%arg0: i32) -> (i32, i32) {
    %c0_i32 = arith.constant 0 : i32
    %c0_i32_0 = arith.constant 0 : i32
    %c0_i32_1 = arith.constant 0 : i32
    return %c0_i32, %c0_i32_0 : i32, i32
  }
  func.func @transform_13(%arg0: i32) -> (i32, i32) {
    %c0_i32 = arith.constant 0 : i32
    %c0_i32_0 = arith.constant 0 : i32
    %c0_i32_1 = arith.constant 0 : i32
    return %c0_i32, %c0_i32_0 : i32, i32
  }
  func.func @transform_14(%arg0: i32) -> (i32, i32) {
    %c0_i32 = arith.constant 0 : i32
    %c0_i32_0 = arith.constant 0 : i32
    %c0_i32_1 = arith.constant 0 : i32
    return %c0_i32, %c0_i32_0 : i32, i32
  }
}

</mosaic_0001>

<llo_original>
// kernel: base_model_embed_forward.1
$region0: #{base_model_embed_forward.1}
  #allocation0 [shape = 'u32[]', space=smem, size = 0x4, offset = 0x4, fixed_abs, tag = 'smem constant byte address 0x4 - core index']
  #allocation1 [shape = 'u32[144,128]{1,0:T(1,128)}', space=vmem, size = 0x12000, scoped, tag = 'internal scratch']
  %s0 = inlined_call_operand.vmem [shape: f32[8,32], index: 0, kind: input, shape index: {}]
  %s1 = inlined_call_operand.vmem [shape: f32[8,8], index: 1, kind: input, shape index: {}]
  %s2 = inlined_call_operand.vmem [shape: bf16[32,32], index: 2, kind: input, shape index: {}]
  %s3 = inlined_call_operand.vmem [shape: f32[1,32], index: 3, kind: input, shape index: {}]
  %s4 = inlined_call_operand.vmem [shape: f32[1,32], index: 4, kind: input, shape index: {}]
  %s5 = inlined_call_operand.vmem [shape: f32[1,32], index: 5, kind: input, shape index: {}]
  %s6 = inlined_call_operand.vmem [shape: bf16[8,16], index: 6, kind: input, shape index: {}]
  %s7 = inlined_call_operand.vmem [shape: bf16[32,16], index: 7, kind: input, shape index: {}]
  %s8 = inlined_call_operand.vmem [shape: bf16[16,16], index: 8, kind: input, shape index: {}]
  %s9 = inlined_call_operand.vmem [shape: f32[1,16], index: 9, kind: input, shape index: {}]
  %s10 = inlined_call_operand.vmem [shape: f32[1,16], index: 10, kind: input, shape index: {}]
  %s11 = inlined_call_operand.vmem [shape: f32[1,16], index: 11, kind: input, shape index: {}]
  %s12 = inlined_call_operand.vmem [shape: bf16[16,128], index: 12, kind: input, shape index: {}]
  %s13 = inlined_call_operand.vmem [shape: f32[1,128], index: 13, kind: input, shape index: {}]
  %s14 = inlined_call_operand.hbm [shape: f32[8,128], index: 14, kind: output, shape index: {}]
  %s15 = sld [smem:[#allocation0]]
  $region66: #{base_model_embed_forward.1} parent=0
    _
  %s17 = ssub.s32 1, %s15
  %s18 = scalar_select 0, %s17, %s15
  $region1: #{base_model_embed_forward.1} parent=0
    #allocation2 [shape = 'u8[4096]{0}', space=vmem, size = 0x1000, scoped, tag = 'output window, operand 0, single buffered']
    #allocation3 [shape = 's32[1]{0}', space=sflag, size = 0x4, scoped, tag = 'scoped memory for base_model_embed_forward.1']
    %19 = vsyncpa [#allocation3], 0
    // Predicated region
    $region2: #{base_model_embed_forward.1} parent=1 // pred_check
      _
    $region3: #{base_model_embed_forward.1} parent=1 // pred_check_branch
      %21 = sbr.rel (0) target = $region5
    $region4: #{base_model_embed_forward.1} parent=1 // pred_region
      _
    $region5: #{base_model_embed_forward.1} parent=1 // pred_fallthru
      _
    // Predicated region
    $region6: #{base_model_embed_forward.1} parent=1 // pred_check
      _
    $region7: #{base_model_embed_forward.1} parent=1 // pred_check_branch
      %23 = sbr.rel (0) target = $region9
    $region8: #{base_model_embed_forward.1} parent=1 // pred_region
      _
    $region9: #{base_model_embed_forward.1} parent=1 // pred_fallthru
      _
    // Predicated region
    $region10: #{base_model_embed_forward.1} parent=1 // pred_check
      _
    $region11: #{base_model_embed_forward.1} parent=1 // pred_check_branch
      %25 = sbr.rel (0) target = $region13
    $region12: #{base_model_embed_forward.1} parent=1 // pred_region
      _
    $region13: #{base_model_embed_forward.1} parent=1 // pred_fallthru
      _
    // Predicated region
    $region14: #{base_model_embed_forward.1} parent=1 // pred_check
      _
    $region15: #{base_model_embed_forward.1} parent=1 // pred_check_branch
      %27 = sbr.rel (0) target = $region17
    $region16: #{base_model_embed_forward.1} parent=1 // pred_region
      _
    $region17: #{base_model_embed_forward.1} parent=1 // pred_fallthru
      _
    // Predicated region
    $region18: #{base_model_embed_forward.1} parent=1 // pred_check
      _
    $region19: #{base_model_embed_forward.1} parent=1 // pred_check_branch
      %29 = sbr.rel (0) target = $region21
    $region20: #{base_model_embed_forward.1} parent=1 // pred_region
      _
    $region21: #{base_model_embed_forward.1} parent=1 // pred_fallthru
      _
    // Predicated region
    $region22: #{base_model_embed_forward.1} parent=1 // pred_check
      _
    $region23: #{base_model_embed_forward.1} parent=1 // pred_check_branch
      %31 = sbr.rel (0) target = $region25
    $region24: #{base_model_embed_forward.1} parent=1 // pred_region
      _
    $region25: #{base_model_embed_forward.1} parent=1 // pred_fallthru
      _
    // Predicated region
    $region26: #{base_model_embed_forward.1} parent=1 // pred_check
      _
    $region27: #{base_model_embed_forward.1} parent=1 // pred_check_branch
      %33 = sbr.rel (0) target = $region29
    $region28: #{base_model_embed_forward.1} parent=1 // pred_region
      _
    $region29: #{base_model_embed_forward.1} parent=1 // pred_fallthru
      _
    // Predicated region
    $region30: #{base_model_embed_forward.1} parent=1 // pred_check
      _
    $region31: #{base_model_embed_forward.1} parent=1 // pred_check_branch
      %35 = sbr.rel (0) target = $region33
    $region32: #{base_model_embed_forward.1} parent=1 // pred_region
      _
    $region33: #{base_model_embed_forward.1} parent=1 // pred_fallthru
      _
    // Predicated region
    $region34: #{base_model_embed_forward.1} parent=1 // pred_check
      _
    $region35: #{base_model_embed_forward.1} parent=1 // pred_check_branch
      %37 = sbr.rel (0) target = $region37
    $region36: #{base_model_embed_forward.1} parent=1 // pred_region
      _
    $region37: #{base_model_embed_forward.1} parent=1 // pred_fallthru
      _
    // Predicated region
    $region38: #{base_model_embed_forward.1} parent=1 // pred_check
      _
    $region39: #{base_model_embed_forward.1} parent=1 // pred_check_branch
      %39 = sbr.rel (0) target = $region41
    $region40: #{base_model_embed_forward.1} parent=1 // pred_region
      _
    $region41: #{base_model_embed_forward.1} parent=1 // pred_fallthru
      _
    // Predicated region
    $region42: #{base_model_embed_forward.1} parent=1 // pred_check
      _
    $region43: #{base_model_embed_forward.1} parent=1 // pred_check_branch
      %41 = sbr.rel (0) target = $region45
    $region44: #{base_model_embed_forward.1} parent=1 // pred_region
      _
    $region45: #{base_model_embed_forward.1} parent=1 // pred_fallthru
      _
    // Predicated region
    $region46: #{base_model_embed_forward.1} parent=1 // pred_check
      _
    $region47: #{base_model_embed_forward.1} parent=1 // pred_check_branch
      %43 = sbr.rel (0) target = $region49
    $region48: #{base_model_embed_forward.1} parent=1 // pred_region
      _
    $region49: #{base_model_embed_forward.1} parent=1 // pred_fallthru
      _
    // Predicated region
    $region50: #{base_model_embed_forward.1} parent=1 // pred_check
      _
    $region51: #{base_model_embed_forward.1} parent=1 // pred_check_branch
      %45 = sbr.rel (0) target = $region53
    $region52: #{base_model_embed_forward.1} parent=1 // pred_region
      _
    $region53: #{base_model_embed_forward.1} parent=1 // pred_fallthru
      _
    // Predicated region
    $region54: #{base_model_embed_forward.1} parent=1 // pred_check
      _
    $region55: #{base_model_embed_forward.1} parent=1 // pred_check_branch
      %47 = sbr.rel (0) target = $region57
    $region56: #{base_model_embed_forward.1} parent=1 // pred_region
      _
    $region57: #{base_model_embed_forward.1} parent=1 // pred_fallthru
      _
    %v49 = vld [vmem:[%s0] sm:$0xff]
    %v50 = vpack.c.bf16 %v49, %v49
    %v51 = vld [vmem:[%s2] sm:$0xf]
    %v52 = vld [vmem:[%s2 + $0x4] sm:$0xf]
    %v53 = vld [vmem:[%s2 + $0x8] sm:$0xf]
    %v54 = vld [vmem:[%s2 + $0xc] sm:$0xf]
    %v55 = vld [vmem:[%s3] sm:$0x1]
    %v57 = vlaneseq
    %v58 = vshrl.u32 %v57, 7
    %v59 = vsub.s32 0, %v58
    %v60 = vrot.slane %v55, %v59
    %v66 = vunpack.c.l.b16 %v51
    %v67 = vunpack.c.l.b16 %v52
    %v68 = vunpack.c.l.b16 %v53
    %v69 = vunpack.c.l.b16 %v54
    %v70 = vpack.c.b16 %v67, %v66
    %v71 = vpack.c.b16 %v69, %v68
    %vm74 = vcmask 261120
    %v76 = vsel %vm74, %v50, 0
    %78 = vmatprep.subr.bf16.mxu0 0
    %79 = vmatpush1.bf16.msra.mxu0 %v70
    %80 = vmatprep.subr.bf16.mxu0 0
    %81 = vmatpush1.bf16.msra.mxu0 %v71
    %82 = vmatprep.subr.bf16.mxu0 0
    %83 = vmatpush1.bf16.msra.mxu0 0
    %84 = vmatprep.subr.bf16.mxu0 0
    %85 = vmatpush1.bf16.msra.mxu0 0
    %86 = vmatprep.subr.bf16.mxu0 0
    %87 = vmatpush1.bf16.msra.mxu0 0
    %88 = vmatprep.subr.bf16.mxu0 0
    %89 = vmatpush1.bf16.msra.mxu0 0
    %90 = vmatprep.subr.bf16.mxu0 0
    %91 = vmatpush1.bf16.msra.mxu0 0
    %92 = vmatprep.subr.bf16.mxu0 0
    %93 = vmatpush1.bf16.msra.mxu0 0
    %94 = vmatprep.subr.bf16.mxu0 0
    %95 = vmatpush1.bf16.msra.mxu0 0
    %96 = vmatprep.subr.bf16.mxu0 0
    %97 = vmatpush1.bf16.msra.mxu0 0
    %98 = vmatprep.subr.bf16.mxu0 0
    %99 = vmatpush1.bf16.msra.mxu0 0
    %100 = vmatprep.subr.bf16.mxu0 0
    %101 = vmatpush1.bf16.msra.mxu0 0
    %102 = vmatprep.subr.bf16.mxu0 0
    %103 = vmatpush1.bf16.msra.mxu0 0
    %104 = vmatprep.subr.bf16.mxu0 0
    %105 = vmatpush1.bf16.msra.mxu0 0
    %106 = vmatprep.subr.bf16.mxu0 0
    %107 = vmatpush1.bf16.msra.mxu0 0
    %108 = vmatprep.subr.bf16.mxu0 0
    %109 = vmatpush1.bf16.msra.mxu0 0
    %110 = vmatprep.mubr.bf16.mxu0 0
    %111 = vmatmul.mubr.bf16.gmra.mrb[0].mxu0 %v76
    %v112 = vpop.f32.mrb[0].mxu0
    %v113 = vadd.f32 %v60, %v112
    %v114 = vpop.f32.mrb[0].mxu0
    %v115 = vpop.f32.mrb[0].mxu0
    %v116 = vpop.f32.mrb[0].mxu0
    %117 = vdwg.mxu0
    %v118 = vsel %vm74, %v113, 0.0
    %v119 = vrot.slane %v118, 4
    %v120 = vadd.f32 %v118, %v119
    %v121 = vrot.slane %v120, 2
    %v122 = vadd.f32 %v120, %v121
    %v123 = vrot.slane %v122, 1
    %v124 = vadd.f32 %v122, %v123
    %v125 = vmul.f32 %v124, 0.125
    %v126 = vmul.f32 %v113, %v113
    %v127 = vsel %vm74, %v126, 0.0
    %v128 = vrot.slane %v127, 4
    %v129 = vadd.f32 %v127, %v128
    %v130 = vrot.slane %v129, 2
    %v131 = vadd.f32 %v129, %v130
    %v132 = vrot.slane %v131, 1
    %v133 = vadd.f32 %v131, %v132
    %v134 = vmul.f32 %v133, 0.125
    %v135 = vmul.f32 %v125, %v125
    %v136 = vsub.f32 %v134, %v135
    %v137 = vmax.f32 %v136, 0.0
    %v138 = vld [vmem:[%s4] sm:$0x1]
    %v139 = vadd.f32 %v137, 1e-05
    %v140 = vrsqrt.pop %v139
    %v141 = vmul.f32 %v138, %v140
    %v142 = vld [vmem:[%s5] sm:$0x1]
    %v143 = vmul.f32 %v125, %v141
    %v144 = vsub.f32 %v142, %v143
    %v146 = vlaneseq
    %v147 = vshrl.u32 %v146, 7
    %v148 = vsub.s32 0, %v147
    %v149 = vrot.slane %v141, %v148
    %v151 = vmul.f32 %v113, %v149
    %v153 = vlaneseq
    %v154 = vshrl.u32 %v153, 7
    %v155 = vsub.s32 0, %v154
    %v156 = vrot.slane %v144, %v155
    %v158 = vadd.f32 %v151, %v156
    %v159 = vmax.f32 %v158, 0.0
    %v160 = vld [vmem:[%s1] sm:$0xff]
    %v161 = vpack.c.bf16 %v160, %v160
    %v162 = vld [vmem:[%s6] sm:$0xf]
    %vm163 = vcmask 64512
    %v165 = vsel %vm163, %v161, 0
    %vm167 = vcmask 1043456
    %v169 = vsel %vm167, %v162, 0
    %171 = vmatprep.subr.bf16.mxu0 0
    %172 = vmatpush1.bf16.msra.mxu0 %v169
    %173 = vmatprep.subr.bf16.mxu0 0
    %174 = vmatpush1.bf16.msra.mxu0 0
    %175 = vmatprep.subr.bf16.mxu0 0
    %176 = vmatpush1.bf16.msra.mxu0 0
    %177 = vmatprep.subr.bf16.mxu0 0
    %178 = vmatpush1.bf16.msra.mxu0 0
    %179 = vmatprep.subr.bf16.mxu0 0
    %180 = vmatpush1.bf16.msra.mxu0 0
    %181 = vmatprep.subr.bf16.mxu0 0
    %182 = vmatpush1.bf16.msra.mxu0 0
    %183 = vmatprep.subr.bf16.mxu0 0
    %184 = vmatpush1.bf16.msra.mxu0 0
    %185 = vmatprep.subr.bf16.mxu0 0
    %186 = vmatpush1.bf16.msra.mxu0 0
    %187 = vmatprep.subr.bf16.mxu0 0
    %188 = vmatpush1.bf16.msra.mxu0 0
    %189 = vmatprep.subr.bf16.mxu0 0
    %190 = vmatpush1.bf16.msra.mxu0 0
    %191 = vmatprep.subr.bf16.mxu0 0
    %192 = vmatpush1.bf16.msra.mxu0 0
    %193 = vmatprep.subr.bf16.mxu0 0
    %194 = vmatpush1.bf16.msra.mxu0 0
    %195 = vmatprep.subr.bf16.mxu0 0
    %196 = vmatpush1.bf16.msra.mxu0 0
    %197 = vmatprep.subr.bf16.mxu0 0
    %198 = vmatpush1.bf16.msra.mxu0 0
    %199 = vmatprep.subr.bf16.mxu0 0
    %200 = vmatpush1.bf16.msra.mxu0 0
    %201 = vmatprep.subr.bf16.mxu0 0
    %202 = vmatpush1.bf16.msra.mxu0 0
    %203 = vmatprep.mubr.bf16.mxu0 0
    %204 = vmatmul.mubr.bf16.gmra.mrb[0].mxu0 %v165
    %v205 = vpop.f32.mrb[0].mxu0
    %v206 = vadd.f32 0.0, %v205
    %v207 = vpop.f32.mrb[0].mxu0
    %v208 = vpop.f32.mrb[0].mxu0
    %v209 = vpop.f32.mrb[0].mxu0
    %210 = vdwg.mxu0
    %v211 = vpack.c.bf16 %v159, %v159
    %v212 = vld [vmem:[%s7] sm:$0xf]
    %v213 = vld [vmem:[%s7 + $0x4] sm:$0xf]
    %v214 = vld [vmem:[%s7 + $0x8] sm:$0xf]
    %v215 = vld [vmem:[%s7 + $0xc] sm:$0xf]
    %v216 = vpack.c.bf16 %v206, %v206
    %v217 = vld [vmem:[%s8] sm:$0xf]
    %v218 = vld [vmem:[%s8 + $0x4] sm:$0xf]
    %v221 = vunpack.c.l.b16 %v217
    %v222 = vunpack.c.l.b16 %v218
    %v223 = vpack.c.b16 %v222, %v221
    %vm225 = vcmask 130048
    %v227 = vsel %vm225, %v216, 0
    %229 = vmatprep.subr.bf16.mxu0 0
    %230 = vmatpush1.bf16.msra.mxu0 %v223
    %231 = vmatprep.subr.bf16.mxu0 0
    %232 = vmatpush1.bf16.msra.mxu0 0
    %233 = vmatprep.subr.bf16.mxu0 0
    %234 = vmatpush1.bf16.msra.mxu0 0
    %235 = vmatprep.subr.bf16.mxu0 0
    %236 = vmatpush1.bf16.msra.mxu0 0
    %237 = vmatprep.subr.bf16.mxu0 0
    %238 = vmatpush1.bf16.msra.mxu0 0
    %239 = vmatprep.subr.bf16.mxu0 0
    %240 = vmatpush1.bf16.msra.mxu0 0
    %241 = vmatprep.subr.bf16.mxu0 0
    %242 = vmatpush1.bf16.msra.mxu0 0
    %243 = vmatprep.subr.bf16.mxu0 0
    %244 = vmatpush1.bf16.msra.mxu0 0
    %245 = vmatprep.subr.bf16.mxu0 0
    %246 = vmatpush1.bf16.msra.mxu0 0
    %247 = vmatprep.subr.bf16.mxu0 0
    %248 = vmatpush1.bf16.msra.mxu0 0
    %249 = vmatprep.subr.bf16.mxu0 0
    %250 = vmatpush1.bf16.msra.mxu0 0
    %251 = vmatprep.subr.bf16.mxu0 0
    %252 = vmatpush1.bf16.msra.mxu0 0
    %253 = vmatprep.subr.bf16.mxu0 0
    %254 = vmatpush1.bf16.msra.mxu0 0
    %255 = vmatprep.subr.bf16.mxu0 0
    %256 = vmatpush1.bf16.msra.mxu0 0
    %257 = vmatprep.subr.bf16.mxu0 0
    %258 = vmatpush1.bf16.msra.mxu0 0
    %259 = vmatprep.subr.bf16.mxu0 0
    %260 = vmatpush1.bf16.msra.mxu0 0
    %261 = vmatprep.mubr.bf16.mxu0 0
    %262 = vmatmul.mubr.bf16.gmra.mrb[0].mxu0 %v227
    %v263 = vpop.f32.mrb[0].mxu0
    %v264 = vadd.f32 0.0, %v263
    %v265 = vpop.f32.mrb[0].mxu0
    %v266 = vpop.f32.mrb[0].mxu0
    %v267 = vpop.f32.mrb[0].mxu0
    %268 = vdwg.mxu0
    %v273 = vunpack.c.l.b16 %v212
    %v274 = vunpack.c.l.b16 %v213
    %v275 = vunpack.c.l.b16 %v214
    %v276 = vunpack.c.l.b16 %v215
    %v277 = vpack.c.b16 %v274, %v273
    %v278 = vpack.c.b16 %v276, %v275
    %v282 = vsel %vm74, %v211, 0
    %284 = vmatprep.subr.bf16.mxu0 0
    %285 = vmatpush1.bf16.msra.mxu0 %v277
    %286 = vmatprep.subr.bf16.mxu0 0
    %287 = vmatpush1.bf16.msra.mxu0 %v278
    %288 = vmatprep.subr.bf16.mxu0 0
    %289 = vmatpush1.bf16.msra.mxu0 0
    %290 = vmatprep.subr.bf16.mxu0 0
    %291 = vmatpush1.bf16.msra.mxu0 0
    %292 = vmatprep.subr.bf16.mxu0 0
    %293 = vmatpush1.bf16.msra.mxu0 0
    %294 = vmatprep.subr.bf16.mxu0 0
    %295 = vmatpush1.bf16.msra.mxu0 0
    %296 = vmatprep.subr.bf16.mxu0 0
    %297 = vmatpush1.bf16.msra.mxu0 0
    %298 = vmatprep.subr.bf16.mxu0 0
    %299 = vmatpush1.bf16.msra.mxu0 0
    %300 = vmatprep.subr.bf16.mxu0 0
    %301 = vmatpush1.bf16.msra.mxu0 0
    %302 = vmatprep.subr.bf16.mxu0 0
    %303 = vmatpush1.bf16.msra.mxu0 0
    %304 = vmatprep.subr.bf16.mxu0 0
    %305 = vmatpush1.bf16.msra.mxu0 0
    %306 = vmatprep.subr.bf16.mxu0 0
    %307 = vmatpush1.bf16.msra.mxu0 0
    %308 = vmatprep.subr.bf16.mxu0 0
    %309 = vmatpush1.bf16.msra.mxu0 0
    %310 = vmatprep.subr.bf16.mxu0 0
    %311 = vmatpush1.bf16.msra.mxu0 0
    %312 = vmatprep.subr.bf16.mxu0 0
    %313 = vmatpush1.bf16.msra.mxu0 0
    %314 = vmatprep.subr.bf16.mxu0 0
    %315 = vmatpush1.bf16.msra.mxu0 0
    %316 = vmatprep.mubr.bf16.mxu0 0
    %317 = vmatmul.mubr.bf16.gmra.mrb[0].mxu0 %v282
    %v318 = vpop.f32.mrb[0].mxu0
    %v319 = vadd.f32 %v264, %v318
    %v320 = vpop.f32.mrb[0].mxu0
    %v321 = vpop.f32.mrb[0].mxu0
    %v322 = vpop.f32.mrb[0].mxu0
    %323 = vdwg.mxu0
    %v324 = vld [vmem:[%s9] sm:$0x1]
    %v326 = vlaneseq
    %v327 = vshrl.u32 %v326, 7
    %v328 = vsub.s32 0, %v327
    %v329 = vrot.slane %v324, %v328
    %v331 = vadd.f32 %v319, %v329
    %v332 = vsel %vm225, %v331, 0.0
    %v333 = vrot.slane %v332, 4
    %v334 = vadd.f32 %v332, %v333
    %v335 = vrot.slane %v334, 2
    %v336 = vadd.f32 %v334, %v335
    %v337 = vrot.slane %v336, 1
    %v338 = vadd.f32 %v336, %v337
    %v339 = vmul.f32 %v338, 0.125
    %v340 = vmul.f32 %v331, %v331
    %v341 = vsel %vm225, %v340, 0.0
    %v342 = vrot.slane %v341, 4
    %v343 = vadd.f32 %v341, %v342
    %v344 = vrot.slane %v343, 2
    %v345 = vadd.f32 %v343, %v344
    %v346 = vrot.slane %v345, 1
    %v347 = vadd.f32 %v345, %v346
    %v348 = vmul.f32 %v347, 0.125
    %v349 = vmul.f32 %v339, %v339
    %v350 = vsub.f32 %v348, %v349
    %v351 = vmax.f32 %v350, 0.0
    %v352 = vld [vmem:[%s10] sm:$0x1]
    %v353 = vadd.f32 %v351, 1e-05
    %v354 = vrsqrt.pop %v353
    %v355 = vmul.f32 %v352, %v354
    %v356 = vld [vmem:[%s11] sm:$0x1]
    %v357 = vmul.f32 %v339, %v355
    %v358 = vsub.f32 %v356, %v357
    %v360 = vlaneseq
    %v361 = vshrl.u32 %v360, 7
    %v362 = vsub.s32 0, %v361
    %v363 = vrot.slane %v355, %v362
    %v365 = vmul.f32 %v331, %v363
    %v367 = vlaneseq
    %v368 = vshrl.u32 %v367, 7
    %v369 = vsub.s32 0, %v368
    %v370 = vrot.slane %v358, %v369
    %v372 = vadd.f32 %v365, %v370
    %v373 = vmax.f32 %v372, 0.0
    %v374 = vpack.c.bf16 %v373, %v373
    %v375 = vld [vmem:[%s12] sm:$0xf]
    %v376 = vld [vmem:[%s12 + $0x4] sm:$0xf]
    %v377 = vld [vmem:[%s13] sm:$0x1]
    %v379 = vlaneseq
    %v380 = vshrl.u32 %v379, 7
    %v381 = vsub.s32 0, %v380
    %v382 = vrot.slane %v377, %v381
    %v386 = vunpack.c.l.b16 %v375
    %v387 = vunpack.c.l.b16 %v376
    %v388 = vpack.c.b16 %v387, %v386
    %v391 = vsel %vm225, %v374, 0
    %393 = vmatprep.subr.bf16.mxu0 0
    %394 = vmatpush1.bf16.msra.mxu0 %v388
    %395 = vmatprep.subr.bf16.mxu0 0
    %396 = vmatpush1.bf16.msra.mxu0 0
    %397 = vmatprep.subr.bf16.mxu0 0
    %398 = vmatpush1.bf16.msra.mxu0 0
    %399 = vmatprep.subr.bf16.mxu0 0
    %400 = vmatpush1.bf16.msra.mxu0 0
    %401 = vmatprep.subr.bf16.mxu0 0
    %402 = vmatpush1.bf16.msra.mxu0 0
    %403 = vmatprep.subr.bf16.mxu0 0
    %404 = vmatpush1.bf16.msra.mxu0 0
    %405 = vmatprep.subr.bf16.mxu0 0
    %406 = vmatpush1.bf16.msra.mxu0 0
    %407 = vmatprep.subr.bf16.mxu0 0
    %408 = vmatpush1.bf16.msra.mxu0 0
    %409 = vmatprep.subr.bf16.mxu0 0
    %410 = vmatpush1.bf16.msra.mxu0 0
    %411 = vmatprep.subr.bf16.mxu0 0
    %412 = vmatpush1.bf16.msra.mxu0 0
    %413 = vmatprep.subr.bf16.mxu0 0
    %414 = vmatpush1.bf16.msra.mxu0 0
    %415 = vmatprep.subr.bf16.mxu0 0
    %416 = vmatpush1.bf16.msra.mxu0 0
    %417 = vmatprep.subr.bf16.mxu0 0
    %418 = vmatpush1.bf16.msra.mxu0 0
    %419 = vmatprep.subr.bf16.mxu0 0
    %420 = vmatpush1.bf16.msra.mxu0 0
    %421 = vmatprep.subr.bf16.mxu0 0
    %422 = vmatpush1.bf16.msra.mxu0 0
    %423 = vmatprep.subr.bf16.mxu0 0
    %424 = vmatpush1.bf16.msra.mxu0 0
    %425 = vmatprep.mubr.bf16.mxu0 0
    %426 = vmatmul.mubr.bf16.gmra.mrb[0].mxu0 %v391
    %v427 = vpop.f32.mrb[0].mxu0
    %v428 = vadd.f32 %v382, %v427
    %v429 = vpop.f32.mrb[0].mxu0
    %v430 = vpop.f32.mrb[0].mxu0
    %v431 = vpop.f32.mrb[0].mxu0
    %432 = vdwg.mxu0
    %433 = vst [vmem:[#allocation2] sm:$0xff] %v428
    // Predicated region
    $region58: #{base_model_embed_forward.1} parent=1 // pred_check
      _
    $region59: #{base_model_embed_forward.1} parent=1 // pred_check_branch
      %435 = sbr.rel (0) target = $region61
    $region60: #{base_model_embed_forward.1} parent=1 // pred_region
      %s437 = ssub.s32 128, 128
      %438 = vsyncadd [#allocation3], %s437
      %s440 = sshll.u32 [#allocation2], 4
      %s441 = int_to_ptr.vmem [resolvable:$true] %s440
      %443 = dma.vmem_to_hbm [thread:$0]  %s441, 128, %s14, [#allocation3]
    $region61: #{base_model_embed_forward.1} parent=1 // pred_fallthru
      _
    // Predicated region
    $region62: #{base_model_embed_forward.1} parent=1 // pred_check
      _
    $region63: #{base_model_embed_forward.1} parent=1 // pred_check_branch
      %445 = sbr.rel (0) target = $region65
    $region64: #{base_model_embed_forward.1} parent=1 // pred_region
      %446 = dma.done [#allocation3], 128
    $region65: #{base_model_embed_forward.1} parent=1 // pred_fallthru
      _
    %447 = vsyncpa [#allocation3], 1

</llo_original>
